<compile_context>
chip_gen: v7x
topology: tpu7x:2x2x1
jax: 0.10.0
libtpu: 0.0.40
codegen_flags: <defaults>
</compile_context>

<pallas_src>
import jax
import jax.numpy as jnp
from jax import lax
from jax.experimental import pallas as pl
from jax.experimental.pallas import tpu as pltpu


def _conv_stats_kernel(w_ref, p_ref, y_ref, sum_ref, ssq_ref, sum_sc, ssq_sc):
    """y^T = W^T @ patches^T on the MXU (+ per-channel sum / sum-of-squares)."""
    i = pl.program_id(0)

    @pl.when(i == 0)
    def _():
        sum_sc[...] = jnp.zeros_like(sum_sc)
        ssq_sc[...] = jnp.zeros_like(ssq_sc)

    # (Cout, K) bf16 @ (K, tm) bf16 -> (Cout, tm) f32 accumulation.
    y = jnp.dot(w_ref[...], p_ref[...], preferred_element_type=jnp.float32)
    y_ref[...] = y
    sum_sc[...] += jnp.sum(y, axis=1, keepdims=True)
    ssq_sc[...] += jnp.sum(y * y, axis=1, keepdims=True)

    @pl.when(i == pl.num_programs(0) - 1)
    def _():
        sum_ref[...] = sum_sc[...]
        ssq_ref[...] = ssq_sc[...]


def _bn_relu_kernel(y_ref, scale_ref, shift_ref, o_ref):
    """Folded BatchNorm (per-channel scale/shift, broadcast over lanes) + ReLU."""
    y = y_ref[...] * scale_ref[...] + shift_ref[...]
    o_ref[...] = jnp.maximum(y, 0.0).astype(o_ref.dtype)


def _pick_tile(m, target=1024):
    """Largest divisor of m that is <= target, preferring multiples of 128."""
    if m <= target:
        return m
    best = None
    for t in range(target, 0, -1):
        if m % t == 0:
            if best is None:
                best = t
            if t % 128 == 0:
                return t
    return best


def spatial_path_3d(x_ncdhw, weight, bias, gamma, beta, eps=1e-5, tm_target=1024):
    """Forward of SpatialPath3DModule.  x: (N, Cin, D, H, W) -> (N, Cout, Do, Ho, Wo)."""
    del bias  # Exactly cancels under training-mode BatchNorm (see file header).
    N, Cin, D, H, W = x_ncdhw.shape
    Cout = weight.shape[0]
    Do, Ho, Wo = (D + 1) // 2, (H + 1) // 2, (W + 1) // 2  # k=3, s=2, p=1
    M = N * Do * Ho * Wo
    K = 27 * Cin

    # ---- glue: transposed im2col in bf16 (gather/transpose only) ----
    x = jnp.transpose(x_ncdhw, (0, 2, 3, 4, 1))            # NDHWC
    xp = jnp.pad(x, ((0, 0), (1, 1), (1, 1), (1, 1), (0, 0)))
    cols = []
    for kd in range(3):
        for kh in range(3):
            for kw in range(3):
                cols.append(xp[:,
                               kd:kd + 2 * Do - 1:2,
                               kh:kh + 2 * Ho - 1:2,
                               kw:kw + 2 * Wo - 1:2, :])
    patches = jnp.stack(cols, axis=0)                      # (27, N, Do, Ho, Wo, Cin)
    patches_t = jnp.transpose(patches, (0, 5, 1, 2, 3, 4)) # (27, Cin, N, Do, Ho, Wo)
    patches_t = patches_t.reshape(K, M).astype(jnp.bfloat16)
    # PyTorch weight (Cout, Cin, kd, kh, kw) -> (Cout, kd, kh, kw, Cin) -> (Cout, K)
    w_t = jnp.transpose(weight, (0, 2, 3, 4, 1)).reshape(Cout, K).astype(jnp.bfloat16)

    tm = _pick_tile(M, tm_target)
    grid = (M // tm,)

    # ---- Pallas kernel 1: conv matmul, accumulate BN batch stats ----
    y_t, ysum, yssq = pl.pallas_call(
        _conv_stats_kernel,
        out_shape=(jax.ShapeDtypeStruct((Cout, M), jnp.float32),
                   jax.ShapeDtypeStruct((Cout, 1), jnp.float32),
                   jax.ShapeDtypeStruct((Cout, 1), jnp.float32)),
        grid_spec=pltpu.PrefetchScalarGridSpec(
            num_scalar_prefetch=0,
            grid=grid,
            in_specs=[pl.BlockSpec((Cout, K), lambda i: (0, 0)),
                      pl.BlockSpec((K, tm), lambda i: (0, i))],
            out_specs=(pl.BlockSpec((Cout, tm), lambda i: (0, i)),
                       pl.BlockSpec((Cout, 1), lambda i: (0, 0)),
                       pl.BlockSpec((Cout, 1), lambda i: (0, 0))),
            scratch_shapes=[pltpu.VMEM((Cout, 1), jnp.float32),
                            pltpu.VMEM((Cout, 1), jnp.float32)]),
        compiler_params=pltpu.CompilerParams(
            dimension_semantics=("arbitrary",)),
    )(w_t, patches_t)

    # ---- glue: fold BN (training-mode batch stats, biased variance) ----
    mean = ysum / M                                         # (Cout, 1)
    var = yssq / M - mean * mean
    scale = (gamma.reshape(Cout, 1) / jnp.sqrt(var + eps)).astype(jnp.float32)
    shift = (beta.reshape(Cout, 1) - mean * scale).astype(jnp.float32)

    # ---- Pallas kernel 2: BN affine + ReLU (in place over y^T) ----
    out_t = pl.pallas_call(
        _bn_relu_kernel,
        out_shape=jax.ShapeDtypeStruct((Cout, M), jnp.float32),
        grid_spec=pltpu.PrefetchScalarGridSpec(
            num_scalar_prefetch=0,
            grid=grid,
            in_specs=[pl.BlockSpec((Cout, tm), lambda i: (0, i)),
                      pl.BlockSpec((Cout, 1), lambda i: (0, 0)),
                      pl.BlockSpec((Cout, 1), lambda i: (0, 0))],
            out_specs=pl.BlockSpec((Cout, tm), lambda i: (0, i))),
        compiler_params=pltpu.CompilerParams(
            dimension_semantics=("parallel",)),
        input_output_aliases={0: 0},
    )(y_t, scale, shift)

    out = out_t.reshape(Cout, N, Do, Ho, Wo)
    return jnp.transpose(out, (1, 0, 2, 3, 4))              # back to NCDHW


def _reference(x, weight, bias, gamma, beta, eps=1e-5):
    """Plain-JAX f32 reference (matches PyTorch training-mode forward)."""
    y = lax.conv_general_dilated(
        x, weight, window_strides=(2, 2, 2), padding=[(1, 1)] * 3,
        dimension_numbers=("NCDHW", "OIDHW", "NCDHW"))
    y = y + bias.reshape(1, -1, 1, 1, 1)
    mean = jnp.mean(y, axis=(0, 2, 3, 4), keepdims=True)
    var = jnp.mean((y - mean) ** 2, axis=(0, 2, 3, 4), keepdims=True)  # biased
    yn = (y - mean) / jnp.sqrt(var + eps)
    yn = yn * gamma.reshape(1, -1, 1, 1, 1) + beta.reshape(1, -1, 1, 1, 1)
    return jnp.maximum(yn, 0.0)


if __name__ == "__main__":
    key = jax.random.PRNGKey(0)
    k1, k2, k3, k4, k5 = jax.random.split(key, 5)

    N, Cin, Cout, D, H, W = 2, 4, 8, 8, 8, 8
    x = jax.random.normal(k1, (N, Cin, D, H, W), dtype=jnp.float32)
    weight = 0.1 * jax.random.normal(k2, (Cout, Cin, 3, 3, 3), dtype=jnp.float32)
    bias = 0.1 * jax.random.normal(k3, (Cout,), dtype=jnp.float32)
    gamma = 1.0 + 0.1 * jax.random.normal(k4, (Cout,), dtype=jnp.float32)
    beta = 0.1 * jax.random.normal(k5, (Cout,), dtype=jnp.float32)

    out = spatial_path_3d(x, weight, bias, gamma, beta)
    out = jax.block_until_ready(out)

    ref = _reference(x, weight, bias, gamma, beta)
    assert out.shape == ref.shape == (N, Cout, D // 2, H // 2, W // 2)
    # Tolerance accounts for bf16 MXU operands (f32 accumulation).
    assert jnp.allclose(out, ref, atol=2e-2, rtol=2e-2), "mismatch vs reference"

    print("KERNEL_OK")
</pallas_src>

<mosaic_0001>
module attributes {stable_mosaic.version = 11 : i64} {
  func.func @_conv_stats_kernel(%arg0: i32, %arg1: memref<8x108xbf16, #tpu.memory_space<vmem>>, %arg2: memref<108x128xbf16, #tpu.memory_space<vmem>>, %arg3: memref<8x128xf32, #tpu.memory_space<vmem>>, %arg4: memref<8x1xf32, #tpu.memory_space<vmem>>, %arg5: memref<8x1xf32, #tpu.memory_space<vmem>>, %arg6: memref<8x1xf32, #tpu.memory_space<vmem>>, %arg7: memref<8x1xf32, #tpu.memory_space<vmem>>) attributes {dimension_semantics = [#tpu.dimension_semantics<arbitrary>], iteration_bounds = array<i64: 1>, scalar_prefetch = 0 : i64, scratch_operands = 2 : i64, tpu.core_type = #tpu.core_type<tc>, window_params = [{pipeline_mode = #tpu.pipeline_mode<synchronous>, transform_indices = @transform_0, window_bounds = array<i64: 8, 108>}, {transform_indices = @transform_1, window_bounds = array<i64: 108, 128>}, {transform_indices = @transform_2, window_bounds = array<i64: 8, 128>}, {pipeline_mode = #tpu.pipeline_mode<synchronous>, transform_indices = @transform_3, window_bounds = array<i64: 8, 1>}, {pipeline_mode = #tpu.pipeline_mode<synchronous>, transform_indices = @transform_4, window_bounds = array<i64: 8, 1>}]} {
    %c0_i32 = arith.constant 0 : i32
    %0 = arith.cmpi eq, %arg0, %c0_i32 : i32
    %1 = arith.extui %0 : i1 to i32
    %c0_i32_0 = arith.constant 0 : i32
    %2 = arith.cmpi ne, %1, %c0_i32_0 : i32
    scf.if %2 {
      %cst_18 = arith.constant 0.000000e+00 : f32
      %21 = vector.broadcast %cst_18 : f32 to vector<8x1xf32>
      %c0_19 = arith.constant 0 : index
      %c0_20 = arith.constant 0 : index
      %22 = vector.load %arg6[%c0_19, %c0_20] : memref<8x1xf32, #tpu.memory_space<vmem>>, vector<8x1xf32>
      tpu.vector_store %arg6[%c0_19, %c0_20], %21 {strides = array<i32>} : memref<8x1xf32, #tpu.memory_space<vmem>>, vector<8x1xf32>,
      %cst_21 = arith.constant 0.000000e+00 : f32
      %23 = vector.broadcast %cst_21 : f32 to vector<8x1xf32>
      %c0_22 = arith.constant 0 : index
      %c0_23 = arith.constant 0 : index
      %24 = vector.load %arg7[%c0_22, %c0_23] : memref<8x1xf32, #tpu.memory_space<vmem>>, vector<8x1xf32>
      tpu.vector_store %arg7[%c0_22, %c0_23], %23 {strides = array<i32>} : memref<8x1xf32, #tpu.memory_space<vmem>>, vector<8x1xf32>,
    } else {
    }
    %c0 = arith.constant 0 : index
    %c0_1 = arith.constant 0 : index
    %3 = vector.load %arg1[%c0, %c0_1] : memref<8x108xbf16, #tpu.memory_space<vmem>>, vector<8x108xbf16>
    %c0_2 = arith.constant 0 : index
    %c0_3 = arith.constant 0 : index
    %4 = vector.load %arg2[%c0_2, %c0_3] : memref<108x128xbf16, #tpu.memory_space<vmem>>, vector<108x128xbf16>
    %cst = arith.constant dense<0.000000e+00> : vector<8x128xf32>
    %5 = tpu.matmul %3, %4, %cst {dimension_numbers = #tpu.dot_dimension_numbers<[1], [0], [0], [1], [0, 0, 1, 1], [], []>} : vector<8x108xbf16>, vector<108x128xbf16>, vector<8x128xf32> -> vector<8x128xf32>
    %c0_4 = arith.constant 0 : index
    %c0_5 = arith.constant 0 : index
    %6 = vector.load %arg3[%c0_4, %c0_5] : memref<8x128xf32, #tpu.memory_space<vmem>>, vector<8x128xf32>
    tpu.vector_store %arg3[%c0_4, %c0_5], %5 {strides = array<i32>} : memref<8x128xf32, #tpu.memory_space<vmem>>, vector<8x128xf32>,
    %c0_6 = arith.constant 0 : index
    %c0_7 = arith.constant 0 : index
    %7 = vector.load %arg6[%c0_6, %c0_7] : memref<8x1xf32, #tpu.memory_space<vmem>>, vector<8x1xf32>
    %cst_8 = arith.constant dense<0.000000e+00> : vector<8xf32>
    %8 = vector.multi_reduction <add>, %5, %cst_8 [1] : vector<8x128xf32> to vector<8xf32>
    %9 = vector.shape_cast %8 : vector<8xf32> to vector<8x1xf32>
    %10 = arith.addf %7, %9 : vector<8x1xf32>
    %c0_9 = arith.constant 0 : index
    %c0_10 = arith.constant 0 : index
    %11 = vector.load %arg6[%c0_9, %c0_10] : memref<8x1xf32, #tpu.memory_space<vmem>>, vector<8x1xf32>
    tpu.vector_store %arg6[%c0_9, %c0_10], %10 {strides = array<i32>} : memref<8x1xf32, #tpu.memory_space<vmem>>, vector<8x1xf32>,
    %c0_11 = arith.constant 0 : index
    %c0_12 = arith.constant 0 : index
    %12 = vector.load %arg7[%c0_11, %c0_12] : memref<8x1xf32, #tpu.memory_space<vmem>>, vector<8x1xf32>
    %13 = arith.mulf %5, %5 : vector<8x128xf32>
    %cst_13 = arith.constant dense<0.000000e+00> : vector<8xf32>
    %14 = vector.multi_reduction <add>, %13, %cst_13 [1] : vector<8x128xf32> to vector<8xf32>
    %15 = vector.shape_cast %14 : vector<8xf32> to vector<8x1xf32>
    %16 = arith.addf %12, %15 : vector<8x1xf32>
    %c0_14 = arith.constant 0 : index
    %c0_15 = arith.constant 0 : index
    %17 = vector.load %arg7[%c0_14, %c0_15] : memref<8x1xf32, #tpu.memory_space<vmem>>, vector<8x1xf32>
    tpu.vector_store %arg7[%c0_14, %c0_15], %16 {strides = array<i32>} : memref<8x1xf32, #tpu.memory_space<vmem>>, vector<8x1xf32>,
    %c0_i32_16 = arith.constant 0 : i32
    %18 = arith.cmpi eq, %arg0, %c0_i32_16 : i32
    %19 = arith.extui %18 : i1 to i32
    %c0_i32_17 = arith.constant 0 : i32
    %20 = arith.cmpi ne, %19, %c0_i32_17 : i32
    scf.if %20 {
      %c0_18 = arith.constant 0 : index
      %c0_19 = arith.constant 0 : index
      %21 = vector.load %arg6[%c0_18, %c0_19] : memref<8x1xf32, #tpu.memory_space<vmem>>, vector<8x1xf32>
      %c0_20 = arith.constant 0 : index
      %c0_21 = arith.constant 0 : index
      %22 = vector.load %arg4[%c0_20, %c0_21] : memref<8x1xf32, #tpu.memory_space<vmem>>, vector<8x1xf32>
      tpu.vector_store %arg4[%c0_20, %c0_21], %21 {strides = array<i32>} : memref<8x1xf32, #tpu.memory_space<vmem>>, vector<8x1xf32>,
      %c0_22 = arith.constant 0 : index
      %c0_23 = arith.constant 0 : index
      %23 = vector.load %arg7[%c0_22, %c0_23] : memref<8x1xf32, #tpu.memory_space<vmem>>, vector<8x1xf32>
      %c0_24 = arith.constant 0 : index
      %c0_25 = arith.constant 0 : index
      %24 = vector.load %arg5[%c0_24, %c0_25] : memref<8x1xf32, #tpu.memory_space<vmem>>, vector<8x1xf32>
      tpu.vector_store %arg5[%c0_24, %c0_25], %23 {strides = array<i32>} : memref<8x1xf32, #tpu.memory_space<vmem>>, vector<8x1xf32>,
    } else {
    }
    return
  }
  func.func @transform_0(%arg0: i32) -> (i32, i32) {
    %c0_i32 = arith.constant 0 : i32
    %c0_i32_0 = arith.constant 0 : i32
    %c0_i32_1 = arith.constant 0 : i32
    return %c0_i32, %c0_i32_0 : i32, i32
  }
  func.func @transform_1(%arg0: i32) -> (i32, i32) {
    %c0_i32 = arith.constant 0 : i32
    %c0_i32_0 = arith.constant 0 : i32
    return %c0_i32, %arg0 : i32, i32
  }
  func.func @transform_2(%arg0: i32) -> (i32, i32) {
    %c0_i32 = arith.constant 0 : i32
    %c0_i32_0 = arith.constant 0 : i32
    return %c0_i32, %arg0 : i32, i32
  }
  func.func @transform_3(%arg0: i32) -> (i32, i32) {
    %c0_i32 = arith.constant 0 : i32
    %c0_i32_0 = arith.constant 0 : i32
    %c0_i32_1 = arith.constant 0 : i32
    return %c0_i32, %c0_i32_0 : i32, i32
  }
  func.func @transform_4(%arg0: i32) -> (i32, i32) {
    %c0_i32 = arith.constant 0 : i32
    %c0_i32_0 = arith.constant 0 : i32
    %c0_i32_1 = arith.constant 0 : i32
    return %c0_i32, %c0_i32_0 : i32, i32
  }
}

</mosaic_0001>

<llo_original>
// kernel: tpu_custom_call.1
$region0: #{tpu_custom_call.1}
  #allocation0 [shape = 'u32[]', space=smem, size = 0x4, offset = 0x4, fixed_abs, tag = 'smem constant byte address 0x4 - core index']
  #allocation1 [shape = 'u32[144,128]{1,0:T(1,128)}', space=vmem, size = 0x12000, scoped, tag = 'internal scratch']
  #allocation2 [shape = 'f32[8,1]{1,0:T(8,128)}', space=vmem, size = 0x1000, scoped, tag = 'scratch operand']
  #allocation3 [shape = 'f32[8,1]{1,0:T(8,128)}', space=vmem, size = 0x1000, scoped, tag = 'scratch operand']
  %s0 = inlined_call_operand.hbm [shape: bf16[8,108], index: 0, kind: input, shape index: {}]
  %s1 = inlined_call_operand.hbm [shape: bf16[108,128], index: 1, kind: input, shape index: {}]
  %s2 = inlined_call_operand.hbm [shape: f32[8,128], index: 2, kind: output, shape index: {0}]
  %s3 = inlined_call_operand.vmem [shape: f32[8,1], index: 3, kind: output, shape index: {1}]
  %s4 = inlined_call_operand.vmem [shape: f32[8,1], index: 4, kind: output, shape index: {2}]
  %5 = xla_tuple %s2, %s3, %s4
  %s6 = sld [smem:[#allocation0]]
  $region50: #{tpu_custom_call.1} parent=0
    _
  %s8 = ssub.s32 1, %s6
  %s9 = scalar_select 0, %s8, %s6
  $region1: #{tpu_custom_call.1} parent=0
    #allocation4 [shape = 'u8[2048]{0}', space=vmem, size = 0x800, scoped, tag = 'input window, operand 0, single buffered']
    #allocation5 [shape = 's32[1]{0}', space=sflag, size = 0x4, scoped, tag = 'scoped memory for tpu_custom_call.1']
    #allocation6 [shape = 's32[1]{0}', space=sflag, size = 0x4, scoped, tag = 'scoped memory for tpu_custom_call.1']
    #allocation7 [shape = 'u8[28672]{0}', space=vmem, size = 0x7000, scoped, tag = 'input window, operand 1, single buffered']
    #allocation8 [shape = 's32[1]{0}', space=sflag, size = 0x4, scoped, tag = 'scoped memory for tpu_custom_call.1']
    #allocation9 [shape = 'u8[4096]{0}', space=vmem, size = 0x1000, scoped, tag = 'output window, operand 0, single buffered']
    %10 = vsyncpa [#allocation5], 0
    %11 = vsyncpa [#allocation8], 0
    %12 = vsyncpa [#allocation6], 0
    // Predicated region
    $region2: #{tpu_custom_call.1} parent=1 // pred_check
      _
    $region3: #{tpu_custom_call.1} parent=1 // pred_check_branch
      %14 = sbr.rel (0) target = $region5
    $region4: #{tpu_custom_call.1} parent=1 // pred_region
      %s16 = ssub.s32 64, 64
      %17 = vsyncadd [#allocation5], %s16
      %s19 = sshll.u32 [#allocation4], 4
      %s20 = int_to_ptr.vmem [resolvable:$true] %s19
      %22 = dma.hbm_to_vmem [thread:$0]  %s0, 64, %s20, [#allocation5]
    $region5: #{tpu_custom_call.1} parent=1 // pred_fallthru
      _
    // Predicated region
    $region6: #{tpu_custom_call.1} parent=1 // pred_check
      _
    $region7: #{tpu_custom_call.1} parent=1 // pred_check_branch
      %24 = sbr.rel (0) target = $region9
    $region8: #{tpu_custom_call.1} parent=1 // pred_region
      %s26 = ssub.s32 896, 896
      %27 = vsyncadd [#allocation8], %s26
      %s28 = sshll.u32 [#allocation7], 4
      %s29 = int_to_ptr.vmem [resolvable:$true] %s28
      %34 = dma.hbm_to_vmem [thread:$0]  %s1, 896, %s29, [#allocation8], 64, 64, 4
    $region9: #{tpu_custom_call.1} parent=1 // pred_fallthru
      _
    // Predicated region
    $region10: #{tpu_custom_call.1} parent=1 // pred_check
      _
    $region11: #{tpu_custom_call.1} parent=1 // pred_check_branch
      %36 = sbr.rel (0) target = $region13
    $region12: #{tpu_custom_call.1} parent=1 // pred_region
      %37 = dma.done [#allocation5], 64
    $region13: #{tpu_custom_call.1} parent=1 // pred_fallthru
      _
    // Predicated region
    $region14: #{tpu_custom_call.1} parent=1 // pred_check
      _
    $region15: #{tpu_custom_call.1} parent=1 // pred_check_branch
      %39 = sbr.rel (0) target = $region17
    $region16: #{tpu_custom_call.1} parent=1 // pred_region
      %40 = dma.done [#allocation8], 896
    $region17: #{tpu_custom_call.1} parent=1 // pred_fallthru
      _
    %p42 = scmp.eq.s32.totalorder 0, 0
    // Predicated region
    $region18: #{tpu_custom_call.1} parent=1 // pred_check
      %p43 = pneg %p42
    $region19: #{tpu_custom_call.1} parent=1 // pred_check_branch
      %45 = sbr.rel (%p43) target = $region21
    $region20: #{tpu_custom_call.1} parent=1 // pred_region
      %vm46 = vcmask 7168
      %47 = vst.msk [vmem:[#allocation2] sm:$0xff] %vm46, 0.0
      %48 = vst.msk [vmem:[#allocation3] sm:$0xff] %vm46, 0.0
    $region21: #{tpu_custom_call.1} parent=1 // pred_fallthru
      _
    %v49 = vld [vmem:[#allocation4] sm:$0xf]
    %v50 = vld [vmem:[#allocation7] sm:$0xf]
    %v51 = vld [vmem:[#allocation7 + $0x4] sm:$0xf]
    %v52 = vld [vmem:[#allocation7 + $0x8] sm:$0xf]
    %v53 = vld [vmem:[#allocation7 + $0xc] sm:$0xf]
    %v54 = vld [vmem:[#allocation7 + $0x10] sm:$0xf]
    %v55 = vld [vmem:[#allocation7 + $0x14] sm:$0xf]
    %v56 = vld [vmem:[#allocation7 + $0x18] sm:$0xf]
    %v57 = vld [vmem:[#allocation7 + $0x1c] sm:$0xf]
    %v58 = vld [vmem:[#allocation7 + $0x20] sm:$0xf]
    %v59 = vld [vmem:[#allocation7 + $0x24] sm:$0xf]
    %v60 = vld [vmem:[#allocation7 + $0x28] sm:$0xf]
    %v61 = vld [vmem:[#allocation7 + $0x2c] sm:$0xf]
    %v62 = vld [vmem:[#allocation7 + $0x30] sm:$0xf]
    %v63 = vld [vmem:[#allocation7 + $0x34] sm:$0x3]
    %v78 = vunpack.c.l.b16 %v50
    %v79 = vunpack.c.l.b16 %v51
    %v80 = vunpack.c.l.b16 %v52
    %v81 = vunpack.c.l.b16 %v53
    %v82 = vunpack.c.l.b16 %v54
    %v83 = vunpack.c.l.b16 %v55
    %v84 = vunpack.c.l.b16 %v56
    %v85 = vunpack.c.l.b16 %v57
    %v86 = vunpack.c.l.b16 %v58
    %v87 = vunpack.c.l.b16 %v59
    %v88 = vunpack.c.l.b16 %v60
    %v89 = vunpack.c.l.b16 %v61
    %v90 = vunpack.c.l.b16 %v62
    %v91 = vunpack.c.l.b16 %v63
    %v92 = vpack.c.b16 %v79, %v78
    %v93 = vpack.c.b16 %v81, %v80
    %v94 = vpack.c.b16 %v83, %v82
    %v95 = vpack.c.b16 %v85, %v84
    %v96 = vpack.c.b16 %v87, %v86
    %v97 = vpack.c.b16 %v89, %v88
    %v98 = vpack.c.b16 %v91, %v90
    %vm105 = vcmask 883712
    %v107 = vsel %vm105, %v49, 0
    %vm109 = vcmask 1045504
    %v111 = vsel %vm109, %v98, 0
    %113 = vmatprep.subr.bf16.mxu0 0
    %114 = vmatpush1.bf16.msra.mxu0 %v92
    %115 = vmatprep.subr.bf16.mxu0 0
    %116 = vmatpush1.bf16.msra.mxu0 %v93
    %117 = vmatprep.subr.bf16.mxu0 0
    %118 = vmatpush1.bf16.msra.mxu0 %v94
    %119 = vmatprep.subr.bf16.mxu0 0
    %120 = vmatpush1.bf16.msra.mxu0 %v95
    %121 = vmatprep.subr.bf16.mxu0 0
    %122 = vmatpush1.bf16.msra.mxu0 %v96
    %123 = vmatprep.subr.bf16.mxu0 0
    %124 = vmatpush1.bf16.msra.mxu0 %v97
    %125 = vmatprep.subr.bf16.mxu0 0
    %126 = vmatpush1.bf16.msra.mxu0 %v111
    %127 = vmatprep.subr.bf16.mxu0 0
    %128 = vmatpush1.bf16.msra.mxu0 0
    %129 = vmatprep.subr.bf16.mxu0 0
    %130 = vmatpush1.bf16.msra.mxu0 0
    %131 = vmatprep.subr.bf16.mxu0 0
    %132 = vmatpush1.bf16.msra.mxu0 0
    %133 = vmatprep.subr.bf16.mxu0 0
    %134 = vmatpush1.bf16.msra.mxu0 0
    %135 = vmatprep.subr.bf16.mxu0 0
    %136 = vmatpush1.bf16.msra.mxu0 0
    %137 = vmatprep.subr.bf16.mxu0 0
    %138 = vmatpush1.bf16.msra.mxu0 0
    %139 = vmatprep.subr.bf16.mxu0 0
    %140 = vmatpush1.bf16.msra.mxu0 0
    %141 = vmatprep.subr.bf16.mxu0 0
    %142 = vmatpush1.bf16.msra.mxu0 0
    %143 = vmatprep.subr.bf16.mxu0 0
    %144 = vmatpush1.bf16.msra.mxu0 0
    %145 = vmatprep.mubr.bf16.mxu0 0
    %146 = vmatmul.mubr.bf16.gmra.mrb[0].mxu0 %v107
    %v147 = vpop.f32.mrb[0].mxu0
    %v148 = vadd.f32 0.0, %v147
    %v149 = vpop.f32.mrb[0].mxu0
    %v150 = vpop.f32.mrb[0].mxu0
    %v151 = vpop.f32.mrb[0].mxu0
    %152 = vdwg.mxu0
    %153 = vst [vmem:[#allocation9] sm:$0xff] %v148
    %v154 = vld [vmem:[#allocation2] sm:$0xff]
    %155 = vadd.xlane.f32.xlu0 %v148
    %v156 = vpop.xlane.xlu0 %155
    %v157 = vadd.f32 %v154, %v156
    %vm158 = vcmask 7168
    %159 = vst.msk [vmem:[#allocation2] sm:$0xff] %vm158, %v157
    %v160 = vld [vmem:[#allocation3] sm:$0xff]
    %v161 = vmul.f32 %v148, %v148
    %162 = vadd.xlane.f32.xlu0 %v161
    %v163 = vpop.xlane.xlu0 %162
    %v164 = vadd.f32 %v160, %v163
    %165 = vst.msk [vmem:[#allocation3] sm:$0xff] %vm158, %v164
    // Predicated region
    $region22: #{tpu_custom_call.1} parent=1 // pred_check
      %p166 = pneg %p42
    $region23: #{tpu_custom_call.1} parent=1 // pred_check_branch
      %168 = sbr.rel (%p166) target = $region25
    $region24: #{tpu_custom_call.1} parent=1 // pred_region
      %v169 = vld [vmem:[#allocation2] sm:$0xff]
      %170 = vst.msk [vmem:[%s3] sm:$0xff] %vm158, %v169
      %v171 = vld [vmem:[#allocation3] sm:$0xff]
      %172 = vst.msk [vmem:[%s4] sm:$0xff] %vm158, %v171
    $region25: #{tpu_custom_call.1} parent=1 // pred_fallthru
      _
    // Predicated region
    $region26: #{tpu_custom_call.1} parent=1 // pred_check
      _
    $region27: #{tpu_custom_call.1} parent=1 // pred_check_branch
      %174 = sbr.rel (0) target = $region29
    $region28: #{tpu_custom_call.1} parent=1 // pred_region
      %s176 = ssub.s32 128, 128
      %177 = vsyncadd [#allocation6], %s176
      %s179 = sshll.u32 [#allocation9], 4
      %s180 = int_to_ptr.vmem [resolvable:$true] %s179
      %182 = dma.vmem_to_hbm [thread:$0]  %s180, 128, %s2, [#allocation6]
    $region29: #{tpu_custom_call.1} parent=1 // pred_fallthru
      _
    // Predicated region
    $region30: #{tpu_custom_call.1} parent=1 // pred_check
      _
    $region31: #{tpu_custom_call.1} parent=1 // pred_check_branch
      %184 = sbr.rel (0) target = $region33
    $region32: #{tpu_custom_call.1} parent=1 // pred_region
      _
    $region33: #{tpu_custom_call.1} parent=1 // pred_fallthru
      _
    // Predicated region
    $region34: #{tpu_custom_call.1} parent=1 // pred_check
      _
    $region35: #{tpu_custom_call.1} parent=1 // pred_check_branch
      %186 = sbr.rel (0) target = $region37
    $region36: #{tpu_custom_call.1} parent=1 // pred_region
      _
    $region37: #{tpu_custom_call.1} parent=1 // pred_fallthru
      _
    // Predicated region
    $region38: #{tpu_custom_call.1} parent=1 // pred_check
      _
    $region39: #{tpu_custom_call.1} parent=1 // pred_check_branch
      %188 = sbr.rel (0) target = $region41
    $region40: #{tpu_custom_call.1} parent=1 // pred_region
      %189 = dma.done [#allocation6], 128
    $region41: #{tpu_custom_call.1} parent=1 // pred_fallthru
      _
    // Predicated region
    $region42: #{tpu_custom_call.1} parent=1 // pred_check
      _
    $region43: #{tpu_custom_call.1} parent=1 // pred_check_branch
      %191 = sbr.rel (0) target = $region45
    $region44: #{tpu_custom_call.1} parent=1 // pred_region
      _
    $region45: #{tpu_custom_call.1} parent=1 // pred_fallthru
      _
    // Predicated region
    $region46: #{tpu_custom_call.1} parent=1 // pred_check
      _
    $region47: #{tpu_custom_call.1} parent=1 // pred_check_branch
      %193 = sbr.rel (0) target = $region49
    $region48: #{tpu_custom_call.1} parent=1 // pred_region
      _
    $region49: #{tpu_custom_call.1} parent=1 // pred_fallthru
      _
    %194 = vsyncpa [#allocation5], 1
    %195 = vsyncpa [#allocation8], 1
    %196 = vsyncpa [#allocation6], 1

</llo_original>
